<compile_context>
chip_gen: v5e
topology: v5e:2x2
jax: 0.10.0
libtpu: 0.0.40
codegen_flags: <defaults>
</compile_context>

<pallas_src>
import jax
import jax.numpy as jnp
from jax.experimental import pallas as pl
from jax.experimental.pallas import tpu as pltpu

# Problem sizes (4*dim_hidden = 128 keeps the gate block exactly one lane span).
S = 8           # sequence length
B = 8           # batch_size (sublane-aligned)
D_IN = 16       # dim_in
H = 32          # dim_hidden
D_OUT = 8       # dim_out
G4 = 4 * H      # 128 = gate width = one full lane span
OUT_PAD = 128   # lane-dense padded output width

# Weight-slab row layout (single (128, 128) f32 VMEM input -> one DMA).
# Every section starts on an 8-row (sublane-tile) boundary.
WX_OFF = 0                # rows [  0,  16) : Wx                    (D_IN, 4H)
WHC_OFF = D_IN            # rows [ 16,  80) : [Wh ; Wc]             (2H, 4H)
W2_OFF = D_IN + 2 * H     # rows [ 80, 112) : W2[:-1], lane-padded  (H, 128)
B1_ROW = W2_OFF + H       # row   112       : b1 = W1[-1]           (1, 4H)
B2_ROW = B1_ROW + 8       # row   120       : b2 = W2[-1], lane-padded
SLAB_ROWS = 128


def lstm_kernel(xs_ref, w_ref, out_ref):
    # ---- one-time loads & bf16 casts (off the serial recurrence) ----------
    wx = w_ref[WX_OFF:WX_OFF + D_IN, :].astype(jnp.bfloat16)       # (16, 128)
    whc = w_ref[WHC_OFF:WHC_OFF + 2 * H, :].astype(jnp.bfloat16)   # (64, 128)
    w2 = w_ref[W2_OFF:W2_OFF + H, :].astype(jnp.bfloat16)          # (32, 128)
    b1 = w_ref[B1_ROW:B1_ROW + 1, :]                               # (1, 128) f32
    b2 = w_ref[B2_ROW:B2_ROW + 1, :]                               # (1, 128) f32

    # Hoisted input projection: ONE bf16 MXU push covering every timestep,
    # accumulated in f32, taken off the serial recurrence critical path.
    xs_bf = xs_ref[...].astype(jnp.bfloat16)                       # (S*B, D_IN)
    xw_all = jnp.dot(xs_bf, wx,
                     preferred_element_type=jnp.float32) + b1      # (S*B, 4H) f32

    h = jnp.zeros((B, H), jnp.float32)
    c = jnp.zeros((B, H), jnp.float32)
    # Packed recurrent state [h | c] -> single K=64 bf16 matmul per step.
    state = jnp.zeros((B, 2 * H), jnp.bfloat16)

    # Static unroll over the (small) sequence length.
    for t in range(S):
        # Per-step serial chain: one bf16 MXU push + sigmoid/tanh + VPU ops.
        ifgo = xw_all[t * B:(t + 1) * B, :] + jnp.dot(
            state, whc, preferred_element_type=jnp.float32)        # (B, 4H) f32
        gates = jax.nn.sigmoid(ifgo)
        i = gates[:, 0:H]
        f = gates[:, H:2 * H]
        g = gates[:, 2 * H:3 * H]
        o = gates[:, 3 * H:4 * H]
        c = f * c + i * (2.0 * g - 1.0)                            # f32 cell update
        h = o * jnp.tanh(c)                                        # f32 hidden
        state = jnp.concatenate([h, c], axis=1).astype(jnp.bfloat16)

    # Lane-dense (B, 128) output block (unmasked vst); real logits live in
    # lanes [0, D_OUT), padded lanes carry zeros from the padded weights.
    out_ref[...] = jnp.dot(h.astype(jnp.bfloat16), w2,
                           preferred_element_type=jnp.float32) + b2


def pack_weight_slab(W1, W2):
    """Pure layout plumbing: pack all weights into one (128, 128) f32 slab."""
    slab = jnp.zeros((SLAB_ROWS, G4), jnp.float32)
    slab = slab.at[WX_OFF:WX_OFF + D_IN, :].set(W1[0:D_IN, :])                # Wx
    slab = slab.at[WHC_OFF:WHC_OFF + 2 * H, :].set(W1[D_IN:D_IN + 2 * H, :])  # [Wh; Wc]
    slab = slab.at[W2_OFF:W2_OFF + H, 0:D_OUT].set(W2[:-1, :])                # W2 (lane-padded)
    slab = slab.at[B1_ROW, :].set(W1[-1, :])                                  # b1
    slab = slab.at[B2_ROW, 0:D_OUT].set(W2[-1, :])                            # b2 (lane-padded)
    return slab


def lstm_net_forward(xs, W1, W2):
    slab = pack_weight_slab(W1, W2)
    xs_flat = xs.reshape(S * B, D_IN)                    # time-major flatten

    out_padded = pl.pallas_call(
        lstm_kernel,
        out_shape=jax.ShapeDtypeStruct((B, OUT_PAD), jnp.float32),
        in_specs=[pl.BlockSpec(memory_space=pltpu.MemorySpace.VMEM)] * 2,
        out_specs=pl.BlockSpec(memory_space=pltpu.MemorySpace.VMEM),
    )(xs_flat, slab)
    return out_padded[:, 0:D_OUT]


def lstm_net_reference(xs, W1, W2):
    """Pure-JAX f32 reference mirroring the PyTorch forward exactly."""
    h = jnp.zeros((B, H), jnp.float32)
    c = jnp.zeros((B, H), jnp.float32)
    for t in range(S):
        x = xs[t]
        ifgo = jnp.concatenate([x, h, c], axis=1) @ W1[:-1] + W1[-1]
        gates = jax.nn.sigmoid(ifgo)
        i, f, g, o = jnp.split(gates, 4, axis=1)
        c = f * c + i * (2.0 * g - 1.0)
        h = o * jnp.tanh(c)
    return h @ W2[:-1] + W2[-1]


def init_params(key):
    k1, k2 = jax.random.split(key)
    # W1 = 0.1 * randn(dim_in + 2*dim_hidden + 1, 4*dim_hidden)
    W1 = 0.1 * jax.random.normal(k1, (D_IN + 2 * H + 1, 4 * H), jnp.float32)
    # W1[-1, H:2H] += 1.0
    W1 = W1.at[-1, H:2 * H].add(1.0)
    # W1[:, 2H:3H] *= 2.0
    W1 = W1.at[:, 2 * H:3 * H].multiply(2.0)
    # W2 = 0.1 * randn(dim_hidden + 1, dim_out)
    W2 = 0.1 * jax.random.normal(k2, (H + 1, D_OUT), jnp.float32)
    return W1, W2


if __name__ == "__main__":
    key = jax.random.PRNGKey(0)
    kx, kp = jax.random.split(key)
    xs = jax.random.normal(kx, (S, B, D_IN), jnp.float32)
    W1, W2 = init_params(kp)

    out = lstm_net_forward(xs, W1, W2)
    out = jax.block_until_ready(out)

    ref = lstm_net_reference(xs, W1, W2)
    assert out.shape == (B, D_OUT)
    # Tolerance relaxed for bf16 MXU operands (per perf review); the gate
    # nonlinearities and cell/hidden updates remain f32.
    assert jnp.allclose(out, ref, atol=3e-2, rtol=3e-2), "mismatch vs JAX reference"

    print("KERNEL_OK")
</pallas_src>

<mosaic_0001>
module attributes {stable_mosaic.version = 11 : i64} {
  func.func @lstm_kernel(%arg0: memref<64x16xf32, #tpu.memory_space<vmem>>, %arg1: memref<128x128xf32, #tpu.memory_space<vmem>>, %arg2: memref<8x128xf32, #tpu.memory_space<vmem>>) attributes {dimension_semantics = [], scalar_prefetch = 0 : i64, scratch_operands = 0 : i64, tpu.core_type = #tpu.core_type<tc>} {
    %c0 = arith.constant 0 : index
    %c0_0 = arith.constant 0 : index
    %0 = vector.load %arg1[%c0, %c0_0] : memref<128x128xf32, #tpu.memory_space<vmem>>, vector<16x128xf32>
    %1 = arith.truncf %0 : vector<16x128xf32> to vector<16x128xbf16>
    %c16 = arith.constant 16 : index
    %c0_1 = arith.constant 0 : index
    %2 = vector.load %arg1[%c16, %c0_1] : memref<128x128xf32, #tpu.memory_space<vmem>>, vector<64x128xf32>
    %3 = arith.truncf %2 : vector<64x128xf32> to vector<64x128xbf16>
    %c80 = arith.constant 80 : index
    %c0_2 = arith.constant 0 : index
    %4 = vector.load %arg1[%c80, %c0_2] : memref<128x128xf32, #tpu.memory_space<vmem>>, vector<32x128xf32>
    %5 = arith.truncf %4 : vector<32x128xf32> to vector<32x128xbf16>
    %c112 = arith.constant 112 : index
    %c0_3 = arith.constant 0 : index
    %6 = vector.load %arg1[%c112, %c0_3] : memref<128x128xf32, #tpu.memory_space<vmem>>, vector<1x128xf32>
    %c120 = arith.constant 120 : index
    %c0_4 = arith.constant 0 : index
    %7 = vector.load %arg1[%c120, %c0_4] : memref<128x128xf32, #tpu.memory_space<vmem>>, vector<1x128xf32>
    %c0_5 = arith.constant 0 : index
    %c0_6 = arith.constant 0 : index
    %8 = vector.load %arg0[%c0_5, %c0_6] : memref<64x16xf32, #tpu.memory_space<vmem>>, vector<64x16xf32>
    %9 = arith.truncf %8 : vector<64x16xf32> to vector<64x16xbf16>
    %cst = arith.constant dense<0.000000e+00> : vector<64x128xf32>
    %10 = tpu.matmul %9, %1, %cst {dimension_numbers = #tpu.dot_dimension_numbers<[1], [0], [0], [1], [0, 0, 1, 1], [], []>} : vector<64x16xbf16>, vector<16x128xbf16>, vector<64x128xf32> -> vector<64x128xf32>
    %11 = vector.broadcast %6 : vector<1x128xf32> to vector<64x128xf32>
    %12 = arith.addf %10, %11 : vector<64x128xf32>
    %cst_7 = arith.constant 0.000000e+00 : f32
    %13 = vector.broadcast %cst_7 : f32 to vector<8x32xf32>
    %cst_8 = arith.constant 0.000000e+00 : bf16
    %14 = vector.broadcast %cst_8 : bf16 to vector<8x64xbf16>
    %15 = vector.extract_strided_slice %12 {offsets = [0, 0], sizes = [8, 128], strides = [1, 1]} : vector<64x128xf32> to vector<8x128xf32>
    %cst_9 = arith.constant dense<0.000000e+00> : vector<8x128xf32>
    %16 = tpu.matmul %14, %3, %cst_9 {dimension_numbers = #tpu.dot_dimension_numbers<[1], [0], [0], [1], [0, 0, 1, 1], [], []>} : vector<8x64xbf16>, vector<64x128xbf16>, vector<8x128xf32> -> vector<8x128xf32>
    %17 = arith.addf %15, %16 : vector<8x128xf32>
    %18 = arith.negf %17 : vector<8x128xf32>
    %19 = math.exp %18 : vector<8x128xf32>
    %cst_10 = arith.constant 1.000000e+00 : f32
    %20 = vector.broadcast %cst_10 : f32 to vector<8x128xf32>
    %21 = arith.addf %20, %19 : vector<8x128xf32>
    %22 = arith.divf %20, %21 : vector<8x128xf32>
    %23 = vector.extract_strided_slice %22 {offsets = [0, 0], sizes = [8, 32], strides = [1, 1]} : vector<8x128xf32> to vector<8x32xf32>
    %24 = vector.extract_strided_slice %22 {offsets = [0, 32], sizes = [8, 32], strides = [1, 1]} : vector<8x128xf32> to vector<8x32xf32>
    %25 = vector.extract_strided_slice %22 {offsets = [0, 64], sizes = [8, 32], strides = [1, 1]} : vector<8x128xf32> to vector<8x32xf32>
    %26 = vector.extract_strided_slice %22 {offsets = [0, 96], sizes = [8, 32], strides = [1, 1]} : vector<8x128xf32> to vector<8x32xf32>
    %27 = arith.mulf %24, %13 : vector<8x32xf32>
    %cst_11 = arith.constant 2.000000e+00 : f32
    %28 = vector.broadcast %cst_11 : f32 to vector<8x32xf32>
    %29 = arith.mulf %28, %25 : vector<8x32xf32>
    %cst_12 = arith.constant 1.000000e+00 : f32
    %30 = vector.broadcast %cst_12 : f32 to vector<8x32xf32>
    %31 = arith.subf %29, %30 : vector<8x32xf32>
    %32 = arith.mulf %23, %31 : vector<8x32xf32>
    %33 = arith.addf %27, %32 : vector<8x32xf32>
    %34 = math.tanh %33 : vector<8x32xf32>
    %35 = arith.mulf %26, %34 : vector<8x32xf32>
    %36 = tpu.concatenate %35, %33 in 1 : vector<8x32xf32>, vector<8x32xf32> -> vector<8x64xf32>
    %37 = arith.truncf %36 : vector<8x64xf32> to vector<8x64xbf16>
    %38 = vector.extract_strided_slice %12 {offsets = [8, 0], sizes = [8, 128], strides = [1, 1]} : vector<64x128xf32> to vector<8x128xf32>
    %cst_13 = arith.constant dense<0.000000e+00> : vector<8x128xf32>
    %39 = tpu.matmul %37, %3, %cst_13 {dimension_numbers = #tpu.dot_dimension_numbers<[1], [0], [0], [1], [0, 0, 1, 1], [], []>} : vector<8x64xbf16>, vector<64x128xbf16>, vector<8x128xf32> -> vector<8x128xf32>
    %40 = arith.addf %38, %39 : vector<8x128xf32>
    %41 = arith.negf %40 : vector<8x128xf32>
    %42 = math.exp %41 : vector<8x128xf32>
    %cst_14 = arith.constant 1.000000e+00 : f32
    %43 = vector.broadcast %cst_14 : f32 to vector<8x128xf32>
    %44 = arith.addf %43, %42 : vector<8x128xf32>
    %45 = arith.divf %43, %44 : vector<8x128xf32>
    %46 = vector.extract_strided_slice %45 {offsets = [0, 0], sizes = [8, 32], strides = [1, 1]} : vector<8x128xf32> to vector<8x32xf32>
    %47 = vector.extract_strided_slice %45 {offsets = [0, 32], sizes = [8, 32], strides = [1, 1]} : vector<8x128xf32> to vector<8x32xf32>
    %48 = vector.extract_strided_slice %45 {offsets = [0, 64], sizes = [8, 32], strides = [1, 1]} : vector<8x128xf32> to vector<8x32xf32>
    %49 = vector.extract_strided_slice %45 {offsets = [0, 96], sizes = [8, 32], strides = [1, 1]} : vector<8x128xf32> to vector<8x32xf32>
    %50 = arith.mulf %47, %33 : vector<8x32xf32>
    %cst_15 = arith.constant 2.000000e+00 : f32
    %51 = vector.broadcast %cst_15 : f32 to vector<8x32xf32>
    %52 = arith.mulf %51, %48 : vector<8x32xf32>
    %cst_16 = arith.constant 1.000000e+00 : f32
    %53 = vector.broadcast %cst_16 : f32 to vector<8x32xf32>
    %54 = arith.subf %52, %53 : vector<8x32xf32>
    %55 = arith.mulf %46, %54 : vector<8x32xf32>
    %56 = arith.addf %50, %55 : vector<8x32xf32>
    %57 = math.tanh %56 : vector<8x32xf32>
    %58 = arith.mulf %49, %57 : vector<8x32xf32>
    %59 = tpu.concatenate %58, %56 in 1 : vector<8x32xf32>, vector<8x32xf32> -> vector<8x64xf32>
    %60 = arith.truncf %59 : vector<8x64xf32> to vector<8x64xbf16>
    %61 = vector.extract_strided_slice %12 {offsets = [16, 0], sizes = [8, 128], strides = [1, 1]} : vector<64x128xf32> to vector<8x128xf32>
    %cst_17 = arith.constant dense<0.000000e+00> : vector<8x128xf32>
    %62 = tpu.matmul %60, %3, %cst_17 {dimension_numbers = #tpu.dot_dimension_numbers<[1], [0], [0], [1], [0, 0, 1, 1], [], []>} : vector<8x64xbf16>, vector<64x128xbf16>, vector<8x128xf32> -> vector<8x128xf32>
    %63 = arith.addf %61, %62 : vector<8x128xf32>
    %64 = arith.negf %63 : vector<8x128xf32>
    %65 = math.exp %64 : vector<8x128xf32>
    %cst_18 = arith.constant 1.000000e+00 : f32
    %66 = vector.broadcast %cst_18 : f32 to vector<8x128xf32>
    %67 = arith.addf %66, %65 : vector<8x128xf32>
    %68 = arith.divf %66, %67 : vector<8x128xf32>
    %69 = vector.extract_strided_slice %68 {offsets = [0, 0], sizes = [8, 32], strides = [1, 1]} : vector<8x128xf32> to vector<8x32xf32>
    %70 = vector.extract_strided_slice %68 {offsets = [0, 32], sizes = [8, 32], strides = [1, 1]} : vector<8x128xf32> to vector<8x32xf32>
    %71 = vector.extract_strided_slice %68 {offsets = [0, 64], sizes = [8, 32], strides = [1, 1]} : vector<8x128xf32> to vector<8x32xf32>
    %72 = vector.extract_strided_slice %68 {offsets = [0, 96], sizes = [8, 32], strides = [1, 1]} : vector<8x128xf32> to vector<8x32xf32>
    %73 = arith.mulf %70, %56 : vector<8x32xf32>
    %cst_19 = arith.constant 2.000000e+00 : f32
    %74 = vector.broadcast %cst_19 : f32 to vector<8x32xf32>
    %75 = arith.mulf %74, %71 : vector<8x32xf32>
    %cst_20 = arith.constant 1.000000e+00 : f32
    %76 = vector.broadcast %cst_20 : f32 to vector<8x32xf32>
    %77 = arith.subf %75, %76 : vector<8x32xf32>
    %78 = arith.mulf %69, %77 : vector<8x32xf32>
    %79 = arith.addf %73, %78 : vector<8x32xf32>
    %80 = math.tanh %79 : vector<8x32xf32>
    %81 = arith.mulf %72, %80 : vector<8x32xf32>
    %82 = tpu.concatenate %81, %79 in 1 : vector<8x32xf32>, vector<8x32xf32> -> vector<8x64xf32>
    %83 = arith.truncf %82 : vector<8x64xf32> to vector<8x64xbf16>
    %84 = vector.extract_strided_slice %12 {offsets = [24, 0], sizes = [8, 128], strides = [1, 1]} : vector<64x128xf32> to vector<8x128xf32>
    %cst_21 = arith.constant dense<0.000000e+00> : vector<8x128xf32>
    %85 = tpu.matmul %83, %3, %cst_21 {dimension_numbers = #tpu.dot_dimension_numbers<[1], [0], [0], [1], [0, 0, 1, 1], [], []>} : vector<8x64xbf16>, vector<64x128xbf16>, vector<8x128xf32> -> vector<8x128xf32>
    %86 = arith.addf %84, %85 : vector<8x128xf32>
    %87 = arith.negf %86 : vector<8x128xf32>
    %88 = math.exp %87 : vector<8x128xf32>
    %cst_22 = arith.constant 1.000000e+00 : f32
    %89 = vector.broadcast %cst_22 : f32 to vector<8x128xf32>
    %90 = arith.addf %89, %88 : vector<8x128xf32>
    %91 = arith.divf %89, %90 : vector<8x128xf32>
    %92 = vector.extract_strided_slice %91 {offsets = [0, 0], sizes = [8, 32], strides = [1, 1]} : vector<8x128xf32> to vector<8x32xf32>
    %93 = vector.extract_strided_slice %91 {offsets = [0, 32], sizes = [8, 32], strides = [1, 1]} : vector<8x128xf32> to vector<8x32xf32>
    %94 = vector.extract_strided_slice %91 {offsets = [0, 64], sizes = [8, 32], strides = [1, 1]} : vector<8x128xf32> to vector<8x32xf32>
    %95 = vector.extract_strided_slice %91 {offsets = [0, 96], sizes = [8, 32], strides = [1, 1]} : vector<8x128xf32> to vector<8x32xf32>
    %96 = arith.mulf %93, %79 : vector<8x32xf32>
    %cst_23 = arith.constant 2.000000e+00 : f32
    %97 = vector.broadcast %cst_23 : f32 to vector<8x32xf32>
    %98 = arith.mulf %97, %94 : vector<8x32xf32>
    %cst_24 = arith.constant 1.000000e+00 : f32
    %99 = vector.broadcast %cst_24 : f32 to vector<8x32xf32>
    %100 = arith.subf %98, %99 : vector<8x32xf32>
    %101 = arith.mulf %92, %100 : vector<8x32xf32>
    %102 = arith.addf %96, %101 : vector<8x32xf32>
    %103 = math.tanh %102 : vector<8x32xf32>
    %104 = arith.mulf %95, %103 : vector<8x32xf32>
    %105 = tpu.concatenate %104, %102 in 1 : vector<8x32xf32>, vector<8x32xf32> -> vector<8x64xf32>
    %106 = arith.truncf %105 : vector<8x64xf32> to vector<8x64xbf16>
    %107 = vector.extract_strided_slice %12 {offsets = [32, 0], sizes = [8, 128], strides = [1, 1]} : vector<64x128xf32> to vector<8x128xf32>
    %cst_25 = arith.constant dense<0.000000e+00> : vector<8x128xf32>
    %108 = tpu.matmul %106, %3, %cst_25 {dimension_numbers = #tpu.dot_dimension_numbers<[1], [0], [0], [1], [0, 0, 1, 1], [], []>} : vector<8x64xbf16>, vector<64x128xbf16>, vector<8x128xf32> -> vector<8x128xf32>
    %109 = arith.addf %107, %108 : vector<8x128xf32>
    %110 = arith.negf %109 : vector<8x128xf32>
    %111 = math.exp %110 : vector<8x128xf32>
    %cst_26 = arith.constant 1.000000e+00 : f32
    %112 = vector.broadcast %cst_26 : f32 to vector<8x128xf32>
    %113 = arith.addf %112, %111 : vector<8x128xf32>
    %114 = arith.divf %112, %113 : vector<8x128xf32>
    %115 = vector.extract_strided_slice %114 {offsets = [0, 0], sizes = [8, 32], strides = [1, 1]} : vector<8x128xf32> to vector<8x32xf32>
    %116 = vector.extract_strided_slice %114 {offsets = [0, 32], sizes = [8, 32], strides = [1, 1]} : vector<8x128xf32> to vector<8x32xf32>
    %117 = vector.extract_strided_slice %114 {offsets = [0, 64], sizes = [8, 32], strides = [1, 1]} : vector<8x128xf32> to vector<8x32xf32>
    %118 = vector.extract_strided_slice %114 {offsets = [0, 96], sizes = [8, 32], strides = [1, 1]} : vector<8x128xf32> to vector<8x32xf32>
    %119 = arith.mulf %116, %102 : vector<8x32xf32>
    %cst_27 = arith.constant 2.000000e+00 : f32
    %120 = vector.broadcast %cst_27 : f32 to vector<8x32xf32>
    %121 = arith.mulf %120, %117 : vector<8x32xf32>
    %cst_28 = arith.constant 1.000000e+00 : f32
    %122 = vector.broadcast %cst_28 : f32 to vector<8x32xf32>
    %123 = arith.subf %121, %122 : vector<8x32xf32>
    %124 = arith.mulf %115, %123 : vector<8x32xf32>
    %125 = arith.addf %119, %124 : vector<8x32xf32>
    %126 = math.tanh %125 : vector<8x32xf32>
    %127 = arith.mulf %118, %126 : vector<8x32xf32>
    %128 = tpu.concatenate %127, %125 in 1 : vector<8x32xf32>, vector<8x32xf32> -> vector<8x64xf32>
    %129 = arith.truncf %128 : vector<8x64xf32> to vector<8x64xbf16>
    %130 = vector.extract_strided_slice %12 {offsets = [40, 0], sizes = [8, 128], strides = [1, 1]} : vector<64x128xf32> to vector<8x128xf32>
    %cst_29 = arith.constant dense<0.000000e+00> : vector<8x128xf32>
    %131 = tpu.matmul %129, %3, %cst_29 {dimension_numbers = #tpu.dot_dimension_numbers<[1], [0], [0], [1], [0, 0, 1, 1], [], []>} : vector<8x64xbf16>, vector<64x128xbf16>, vector<8x128xf32> -> vector<8x128xf32>
    %132 = arith.addf %130, %131 : vector<8x128xf32>
    %133 = arith.negf %132 : vector<8x128xf32>
    %134 = math.exp %133 : vector<8x128xf32>
    %cst_30 = arith.constant 1.000000e+00 : f32
    %135 = vector.broadcast %cst_30 : f32 to vector<8x128xf32>
    %136 = arith.addf %135, %134 : vector<8x128xf32>
    %137 = arith.divf %135, %136 : vector<8x128xf32>
    %138 = vector.extract_strided_slice %137 {offsets = [0, 0], sizes = [8, 32], strides = [1, 1]} : vector<8x128xf32> to vector<8x32xf32>
    %139 = vector.extract_strided_slice %137 {offsets = [0, 32], sizes = [8, 32], strides = [1, 1]} : vector<8x128xf32> to vector<8x32xf32>
    %140 = vector.extract_strided_slice %137 {offsets = [0, 64], sizes = [8, 32], strides = [1, 1]} : vector<8x128xf32> to vector<8x32xf32>
    %141 = vector.extract_strided_slice %137 {offsets = [0, 96], sizes = [8, 32], strides = [1, 1]} : vector<8x128xf32> to vector<8x32xf32>
    %142 = arith.mulf %139, %125 : vector<8x32xf32>
    %cst_31 = arith.constant 2.000000e+00 : f32
    %143 = vector.broadcast %cst_31 : f32 to vector<8x32xf32>
    %144 = arith.mulf %143, %140 : vector<8x32xf32>
    %cst_32 = arith.constant 1.000000e+00 : f32
    %145 = vector.broadcast %cst_32 : f32 to vector<8x32xf32>
    %146 = arith.subf %144, %145 : vector<8x32xf32>
    %147 = arith.mulf %138, %146 : vector<8x32xf32>
    %148 = arith.addf %142, %147 : vector<8x32xf32>
    %149 = math.tanh %148 : vector<8x32xf32>
    %150 = arith.mulf %141, %149 : vector<8x32xf32>
    %151 = tpu.concatenate %150, %148 in 1 : vector<8x32xf32>, vector<8x32xf32> -> vector<8x64xf32>
    %152 = arith.truncf %151 : vector<8x64xf32> to vector<8x64xbf16>
    %153 = vector.extract_strided_slice %12 {offsets = [48, 0], sizes = [8, 128], strides = [1, 1]} : vector<64x128xf32> to vector<8x128xf32>
    %cst_33 = arith.constant dense<0.000000e+00> : vector<8x128xf32>
    %154 = tpu.matmul %152, %3, %cst_33 {dimension_numbers = #tpu.dot_dimension_numbers<[1], [0], [0], [1], [0, 0, 1, 1], [], []>} : vector<8x64xbf16>, vector<64x128xbf16>, vector<8x128xf32> -> vector<8x128xf32>
    %155 = arith.addf %153, %154 : vector<8x128xf32>
    %156 = arith.negf %155 : vector<8x128xf32>
    %157 = math.exp %156 : vector<8x128xf32>
    %cst_34 = arith.constant 1.000000e+00 : f32
    %158 = vector.broadcast %cst_34 : f32 to vector<8x128xf32>
    %159 = arith.addf %158, %157 : vector<8x128xf32>
    %160 = arith.divf %158, %159 : vector<8x128xf32>
    %161 = vector.extract_strided_slice %160 {offsets = [0, 0], sizes = [8, 32], strides = [1, 1]} : vector<8x128xf32> to vector<8x32xf32>
    %162 = vector.extract_strided_slice %160 {offsets = [0, 32], sizes = [8, 32], strides = [1, 1]} : vector<8x128xf32> to vector<8x32xf32>
    %163 = vector.extract_strided_slice %160 {offsets = [0, 64], sizes = [8, 32], strides = [1, 1]} : vector<8x128xf32> to vector<8x32xf32>
    %164 = vector.extract_strided_slice %160 {offsets = [0, 96], sizes = [8, 32], strides = [1, 1]} : vector<8x128xf32> to vector<8x32xf32>
    %165 = arith.mulf %162, %148 : vector<8x32xf32>
    %cst_35 = arith.constant 2.000000e+00 : f32
    %166 = vector.broadcast %cst_35 : f32 to vector<8x32xf32>
    %167 = arith.mulf %166, %163 : vector<8x32xf32>
    %cst_36 = arith.constant 1.000000e+00 : f32
    %168 = vector.broadcast %cst_36 : f32 to vector<8x32xf32>
    %169 = arith.subf %167, %168 : vector<8x32xf32>
    %170 = arith.mulf %161, %169 : vector<8x32xf32>
    %171 = arith.addf %165, %170 : vector<8x32xf32>
    %172 = math.tanh %171 : vector<8x32xf32>
    %173 = arith.mulf %164, %172 : vector<8x32xf32>
    %174 = tpu.concatenate %173, %171 in 1 : vector<8x32xf32>, vector<8x32xf32> -> vector<8x64xf32>
    %175 = arith.truncf %174 : vector<8x64xf32> to vector<8x64xbf16>
    %176 = vector.extract_strided_slice %12 {offsets = [56, 0], sizes = [8, 128], strides = [1, 1]} : vector<64x128xf32> to vector<8x128xf32>
    %cst_37 = arith.constant dense<0.000000e+00> : vector<8x128xf32>
    %177 = tpu.matmul %175, %3, %cst_37 {dimension_numbers = #tpu.dot_dimension_numbers<[1], [0], [0], [1], [0, 0, 1, 1], [], []>} : vector<8x64xbf16>, vector<64x128xbf16>, vector<8x128xf32> -> vector<8x128xf32>
    %178 = arith.addf %176, %177 : vector<8x128xf32>
    %179 = arith.negf %178 : vector<8x128xf32>
    %180 = math.exp %179 : vector<8x128xf32>
    %cst_38 = arith.constant 1.000000e+00 : f32
    %181 = vector.broadcast %cst_38 : f32 to vector<8x128xf32>
    %182 = arith.addf %181, %180 : vector<8x128xf32>
    %183 = arith.divf %181, %182 : vector<8x128xf32>
    %184 = vector.extract_strided_slice %183 {offsets = [0, 0], sizes = [8, 32], strides = [1, 1]} : vector<8x128xf32> to vector<8x32xf32>
    %185 = vector.extract_strided_slice %183 {offsets = [0, 32], sizes = [8, 32], strides = [1, 1]} : vector<8x128xf32> to vector<8x32xf32>
    %186 = vector.extract_strided_slice %183 {offsets = [0, 64], sizes = [8, 32], strides = [1, 1]} : vector<8x128xf32> to vector<8x32xf32>
    %187 = vector.extract_strided_slice %183 {offsets = [0, 96], sizes = [8, 32], strides = [1, 1]} : vector<8x128xf32> to vector<8x32xf32>
    %188 = arith.mulf %185, %171 : vector<8x32xf32>
    %cst_39 = arith.constant 2.000000e+00 : f32
    %189 = vector.broadcast %cst_39 : f32 to vector<8x32xf32>
    %190 = arith.mulf %189, %186 : vector<8x32xf32>
    %cst_40 = arith.constant 1.000000e+00 : f32
    %191 = vector.broadcast %cst_40 : f32 to vector<8x32xf32>
    %192 = arith.subf %190, %191 : vector<8x32xf32>
    %193 = arith.mulf %184, %192 : vector<8x32xf32>
    %194 = arith.addf %188, %193 : vector<8x32xf32>
    %195 = math.tanh %194 : vector<8x32xf32>
    %196 = arith.mulf %187, %195 : vector<8x32xf32>
    %197 = arith.truncf %196 : vector<8x32xf32> to vector<8x32xbf16>
    %cst_41 = arith.constant dense<0.000000e+00> : vector<8x128xf32>
    %198 = tpu.matmul %197, %5, %cst_41 {dimension_numbers = #tpu.dot_dimension_numbers<[1], [0], [0], [1], [0, 0, 1, 1], [], []>} : vector<8x32xbf16>, vector<32x128xbf16>, vector<8x128xf32> -> vector<8x128xf32>
    %199 = vector.broadcast %7 : vector<1x128xf32> to vector<8x128xf32>
    %200 = arith.addf %198, %199 : vector<8x128xf32>
    %c0_42 = arith.constant 0 : index
    %c0_43 = arith.constant 0 : index
    %201 = vector.load %arg2[%c0_42, %c0_43] : memref<8x128xf32, #tpu.memory_space<vmem>>, vector<8x128xf32>
    tpu.vector_store %arg2[%c0_42, %c0_43], %200 {strides = array<i32>} : memref<8x128xf32, #tpu.memory_space<vmem>>, vector<8x128xf32>,
    return
  }
}

</mosaic_0001>

<llo_original>
// kernel: tpu_custom_call.1
$region0: #{tpu_custom_call.1}
  #allocation0 [shape = 'u32[]', space=smem, size = 0x4, offset = 0x4, fixed_abs, tag = 'smem constant byte address 0x4 - core index']
  #allocation1 [shape = 'u32[72,128]{1,0:T(1,128)}', space=vmem, size = 0x9000, scoped, tag = 'internal scratch']
  %s0 = inlined_call_operand.vmem [shape: f32[64,16], index: 0, kind: input, shape index: {}]
  %s1 = inlined_call_operand.hbm [shape: f32[128,128], index: 1, kind: input, shape index: {}]
  %s2 = inlined_call_operand.hbm [shape: f32[8,128], index: 2, kind: output, shape index: {}]
  %s3 = sld [smem:[#allocation0]]
  $region22: #{tpu_custom_call.1} parent=0
    _
  %s5 = ssub.s32 1, %s3
  %s6 = scalar_select 0, %s5, %s3
  $region1: #{tpu_custom_call.1} parent=0
    #allocation2 [shape = 'u8[65536]{0}', space=vmem, size = 0x10000, scoped, tag = 'input window, operand 1, single buffered']
    #allocation3 [shape = 's32[1]{0}', space=sflag, size = 0x4, scoped, tag = 'scoped memory for tpu_custom_call.1']
    #allocation4 [shape = 's32[1]{0}', space=sflag, size = 0x4, scoped, tag = 'scoped memory for tpu_custom_call.1']
    #allocation5 [shape = 'u8[4096]{0}', space=vmem, size = 0x1000, scoped, tag = 'output window, operand 0, single buffered']
    %7 = vsyncpa [#allocation3], 0
    %8 = vsyncpa [#allocation4], 0
    // Predicated region
    $region2: #{tpu_custom_call.1} parent=1 // pred_check
      _
    $region3: #{tpu_custom_call.1} parent=1 // pred_check_branch
      %10 = sbr.rel (0) target = $region5
    $region4: #{tpu_custom_call.1} parent=1 // pred_region
      _
    $region5: #{tpu_custom_call.1} parent=1 // pred_fallthru
      _
    // Predicated region
    $region6: #{tpu_custom_call.1} parent=1 // pred_check
      _
    $region7: #{tpu_custom_call.1} parent=1 // pred_check_branch
      %12 = sbr.rel (0) target = $region9
    $region8: #{tpu_custom_call.1} parent=1 // pred_region
      %14 = vsyncadd [#allocation3], 0
      %s15 = sshll.u32 %s1, 4
      %s16 = int_to_ptr.hbm [resolvable:$true] %s15
      %s17 = sshll.u32 [#allocation2], 4
      %s18 = int_to_ptr.vmem [resolvable:$true] %s17
      %23 = dma.hbm_to_vmem [thread:$0]  %s16, 2048, %s18, [#allocation3], 128, 128, 8
    $region9: #{tpu_custom_call.1} parent=1 // pred_fallthru
      _
    // Predicated region
    $region10: #{tpu_custom_call.1} parent=1 // pred_check
      _
    $region11: #{tpu_custom_call.1} parent=1 // pred_check_branch
      %25 = sbr.rel (0) target = $region13
    $region12: #{tpu_custom_call.1} parent=1 // pred_region
      %27 = dma.done [#allocation3], 2048
    $region13: #{tpu_custom_call.1} parent=1 // pred_fallthru
      _
    %v29 = vld [vmem:[#allocation2] sm:$0xff]
    %v30 = vld [vmem:[#allocation2 + $0x8] sm:$0xff]
    %v31 = vpack.c.bf16 %v30, %v29
    %v32 = vld [vmem:[#allocation2 + $0x10] sm:$0xff]
    %v33 = vld [vmem:[#allocation2 + $0x18] sm:$0xff]
    %v34 = vld [vmem:[#allocation2 + $0x20] sm:$0xff]
    %v35 = vld [vmem:[#allocation2 + $0x28] sm:$0xff]
    %v36 = vld [vmem:[#allocation2 + $0x30] sm:$0xff]
    %v37 = vld [vmem:[#allocation2 + $0x38] sm:$0xff]
    %v38 = vld [vmem:[#allocation2 + $0x40] sm:$0xff]
    %v39 = vld [vmem:[#allocation2 + $0x48] sm:$0xff]
    %v40 = vpack.c.bf16 %v33, %v32
    %v41 = vpack.c.bf16 %v35, %v34
    %v42 = vpack.c.bf16 %v37, %v36
    %v43 = vpack.c.bf16 %v39, %v38
    %v44 = vld [vmem:[#allocation2 + $0x50] sm:$0xff]
    %v45 = vld [vmem:[#allocation2 + $0x58] sm:$0xff]
    %v46 = vld [vmem:[#allocation2 + $0x60] sm:$0xff]
    %v47 = vld [vmem:[#allocation2 + $0x68] sm:$0xff]
    %v48 = vpack.c.bf16 %v45, %v44
    %v49 = vpack.c.bf16 %v47, %v46
    %v50 = vld [vmem:[#allocation2 + $0x70] sm:$0x1]
    %v51 = vld [vmem:[#allocation2 + $0x78] sm:$0x1]
    %v52 = vld [vmem:[%s0] sm:$0xff]
    %v53 = vld [vmem:[%s0 + $0x8] sm:$0xff]
    %v54 = vld [vmem:[%s0 + $0x10] sm:$0xff]
    %v55 = vld [vmem:[%s0 + $0x18] sm:$0xff]
    %v56 = vld [vmem:[%s0 + $0x20] sm:$0xff]
    %v57 = vld [vmem:[%s0 + $0x28] sm:$0xff]
    %v58 = vld [vmem:[%s0 + $0x30] sm:$0xff]
    %v59 = vld [vmem:[%s0 + $0x38] sm:$0xff]
    %v60 = vpack.c.bf16 %v53, %v52
    %v61 = vpack.c.bf16 %v55, %v54
    %v62 = vpack.c.bf16 %v57, %v56
    %v63 = vpack.c.bf16 %v59, %v58
    %v64 = vperm.slane %v50, 0
    %vm65 = vcmask 130048
    %v67 = vsel %vm65, %v60, 0
    %v70 = vsel %vm65, %v61, 0
    %v73 = vsel %vm65, %v62, 0
    %v76 = vsel %vm65, %v63, 0
    %78 = vmatpush.bf16.msra.mxu0 0
    %79 = vmatpush.bf16.msra.mxu0 0
    %80 = vmatpush.bf16.msra.mxu0 0
    %81 = vmatpush.bf16.msra.mxu0 0
    %82 = vmatpush.bf16.msra.mxu0 0
    %83 = vmatpush.bf16.msra.mxu0 0
    %84 = vmatpush.bf16.msra.mxu0 0
    %85 = vmatpush.bf16.msra.mxu0 %v31
    %86 = vmatmul.bf16.gmra.mxu0 %v67
    %v87 = vpop.f32.mrf.mxu0
    %v88 = vadd.f32 %v64, %v87
    %v89 = vpop.f32.mrf.mxu0
    %v90 = vadd.f32 %v64, %v89
    %91 = vmatmul.bf16.gmra.mxu0 %v70
    %v92 = vpop.f32.mrf.mxu0
    %v93 = vadd.f32 %v64, %v92
    %v94 = vpop.f32.mrf.mxu0
    %v95 = vadd.f32 %v64, %v94
    %96 = vmatmul.bf16.gmra.mxu0 %v73
    %v97 = vpop.f32.mrf.mxu0
    %v98 = vadd.f32 %v64, %v97
    %v99 = vpop.f32.mrf.mxu0
    %v100 = vadd.f32 %v64, %v99
    %101 = vmatmul.bf16.gmra.mxu0 %v76
    %v102 = vpop.f32.mrf.mxu0
    %v103 = vadd.f32 %v64, %v102
    %v104 = vpop.f32.mrf.mxu0
    %v105 = vadd.f32 %v64, %v104
    %106 = vdwg.mxu0
    %vm107 = vcmask 523264
    %v109 = vsel %vm107, 0, 0
    %111 = vmatpush.bf16.msra.mxu0 0
    %112 = vmatpush.bf16.msra.mxu0 0
    %113 = vmatpush.bf16.msra.mxu0 0
    %114 = vmatpush.bf16.msra.mxu0 0
    %115 = vmatpush.bf16.msra.mxu0 %v43
    %116 = vmatpush.bf16.msra.mxu0 %v42
    %117 = vmatpush.bf16.msra.mxu0 %v41
    %118 = vmatpush.bf16.msra.mxu0 %v40
    %119 = vmatmul.bf16.gmra.mxu0 %v109
    %v120 = vpop.f32.mrf.mxu0
    %v121 = vadd.f32 0.0, %v120
    %v122 = vpop.f32.mrf.mxu0
    %123 = vdwg.mxu0
    %v124 = vadd.f32 %v88, %v121
    %v125 = vxor.u32 %v124, 2147483648
    %v126 = vmul.f32 %v125, 1.442695
    %v127 = vpow.pop %v126
    %v128 = vadd.f32 %v127, 1.0
    %v129 = vrcp.pop %v128
    %v130 = vmul.f32 %v128, %v129
    %v131 = vsub.f32 1.0, %v130
    %v132 = vmul.f32 %v129, %v131
    %v133 = vadd.f32 %v129, %v132
    %vm134 = vweird.f32 %v128
    %vm135 = vweird.f32 %v129
    %vm136 = vmor %vm134, %vm135
    %v137 = vsel %vm136, %v129, %v133
    %v138 = vand.u32 2147483647, %v128
    %vm139 = vcmp.eq.f32.partialorder %v138, 8.507059e+37
    %v140 = vand.u32 %v128, 2147483648
    %v141 = vor.u32 1.1754944e-38, %v140
    %v142 = vsel %vm139, %v141, %v137
    %v143 = vmul.f32 1.0, %v142
    %v144 = vmul.f32 %v143, 0.0
    %v145 = vmul.f32 %v143, 2.0
    %v146 = vsub.f32 %v145, 1.0
    %148 = vrot.lane.b32.xlu0 %v146, 64
    %v149 = vpop.permute.xlu0 %148
    %v151 = vmul.f32 %v143, %v149
    %153 = vrot.lane.b32.xlu0 %v151, 32
    %v154 = vpop.permute.xlu0 %153
    %v156 = vadd.f32 %v144, %v154
    %v157 = vtanh.pop %v156
    %159 = vrot.lane.b32.xlu0 %v157, 64
    %v160 = vpop.permute.xlu0 %159
    %v162 = vmul.f32 %v143, %v160
    %164 = vrot.lane.b32.xlu0 %v162, 32
    %v165 = vpop.permute.xlu0 %164
    %vm167 = vcmask 261120
    %v168 = vsel %vm167, %v165, %v156
    %v169 = vpack.c.bf16 %v168, %v168
    %v171 = vsel %vm107, %v169, 0
    %173 = vmatpush.bf16.msra.mxu0 0
    %174 = vmatpush.bf16.msra.mxu0 0
    %175 = vmatpush.bf16.msra.mxu0 0
    %176 = vmatpush.bf16.msra.mxu0 0
    %177 = vmatpush.bf16.msra.mxu0 %v43
    %178 = vmatpush.bf16.msra.mxu0 %v42
    %179 = vmatpush.bf16.msra.mxu0 %v41
    %180 = vmatpush.bf16.msra.mxu0 %v40
    %181 = vmatmul.bf16.gmra.mxu0 %v171
    %v182 = vpop.f32.mrf.mxu0
    %v183 = vadd.f32 0.0, %v182
    %v184 = vpop.f32.mrf.mxu0
    %185 = vdwg.mxu0
    %v186 = vadd.f32 %v90, %v183
    %v187 = vxor.u32 %v186, 2147483648
    %v188 = vmul.f32 %v187, 1.442695
    %v189 = vpow.pop %v188
    %v190 = vadd.f32 %v189, 1.0
    %v191 = vrcp.pop %v190
    %v192 = vmul.f32 %v190, %v191
    %v193 = vsub.f32 1.0, %v192
    %v194 = vmul.f32 %v191, %v193
    %v195 = vadd.f32 %v191, %v194
    %vm196 = vweird.f32 %v190
    %vm197 = vweird.f32 %v191
    %vm198 = vmor %vm196, %vm197
    %v199 = vsel %vm198, %v191, %v195
    %v200 = vand.u32 2147483647, %v190
    %vm201 = vcmp.eq.f32.partialorder %v200, 8.507059e+37
    %v202 = vand.u32 %v190, 2147483648
    %v203 = vor.u32 1.1754944e-38, %v202
    %v204 = vsel %vm201, %v203, %v199
    %v205 = vmul.f32 1.0, %v204
    %v206 = vmul.f32 %v205, %v156
    %v207 = vmul.f32 %v205, 2.0
    %v208 = vsub.f32 %v207, 1.0
    %210 = vrot.lane.b32.xlu0 %v208, 64
    %v211 = vpop.permute.xlu0 %210
    %v213 = vmul.f32 %v205, %v211
    %215 = vrot.lane.b32.xlu0 %v213, 32
    %v216 = vpop.permute.xlu0 %215
    %v218 = vadd.f32 %v206, %v216
    %v219 = vtanh.pop %v218
    %221 = vrot.lane.b32.xlu0 %v219, 64
    %v222 = vpop.permute.xlu0 %221
    %v224 = vmul.f32 %v205, %v222
    %226 = vrot.lane.b32.xlu0 %v224, 32
    %v227 = vpop.permute.xlu0 %226
    %v229 = vsel %vm167, %v227, %v218
    %v230 = vpack.c.bf16 %v229, %v229
    %v232 = vsel %vm107, %v230, 0
    %234 = vmatpush.bf16.msra.mxu0 0
    %235 = vmatpush.bf16.msra.mxu0 0
    %236 = vmatpush.bf16.msra.mxu0 0
    %237 = vmatpush.bf16.msra.mxu0 0
    %238 = vmatpush.bf16.msra.mxu0 %v43
    %239 = vmatpush.bf16.msra.mxu0 %v42
    %240 = vmatpush.bf16.msra.mxu0 %v41
    %241 = vmatpush.bf16.msra.mxu0 %v40
    %242 = vmatmul.bf16.gmra.mxu0 %v232
    %v243 = vpop.f32.mrf.mxu0
    %v244 = vadd.f32 0.0, %v243
    %v245 = vpop.f32.mrf.mxu0
    %246 = vdwg.mxu0
    %v247 = vadd.f32 %v93, %v244
    %v248 = vxor.u32 %v247, 2147483648
    %v249 = vmul.f32 %v248, 1.442695
    %v250 = vpow.pop %v249
    %v251 = vadd.f32 %v250, 1.0
    %v252 = vrcp.pop %v251
    %v253 = vmul.f32 %v251, %v252
    %v254 = vsub.f32 1.0, %v253
    %v255 = vmul.f32 %v252, %v254
    %v256 = vadd.f32 %v252, %v255
    %vm257 = vweird.f32 %v251
    %vm258 = vweird.f32 %v252
    %vm259 = vmor %vm257, %vm258
    %v260 = vsel %vm259, %v252, %v256
    %v261 = vand.u32 2147483647, %v251
    %vm262 = vcmp.eq.f32.partialorder %v261, 8.507059e+37
    %v263 = vand.u32 %v251, 2147483648
    %v264 = vor.u32 1.1754944e-38, %v263
    %v265 = vsel %vm262, %v264, %v260
    %v266 = vmul.f32 1.0, %v265
    %v267 = vmul.f32 %v266, %v218
    %v268 = vmul.f32 %v266, 2.0
    %v269 = vsub.f32 %v268, 1.0
    %271 = vrot.lane.b32.xlu0 %v269, 64
    %v272 = vpop.permute.xlu0 %271
    %v274 = vmul.f32 %v266, %v272
    %276 = vrot.lane.b32.xlu0 %v274, 32
    %v277 = vpop.permute.xlu0 %276
    %v279 = vadd.f32 %v267, %v277
    %v280 = vtanh.pop %v279
    %282 = vrot.lane.b32.xlu0 %v280, 64
    %v283 = vpop.permute.xlu0 %282
    %v285 = vmul.f32 %v266, %v283
    %287 = vrot.lane.b32.xlu0 %v285, 32
    %v288 = vpop.permute.xlu0 %287
    %v290 = vsel %vm167, %v288, %v279
    %v291 = vpack.c.bf16 %v290, %v290
    %v293 = vsel %vm107, %v291, 0
    %295 = vmatpush.bf16.msra.mxu0 0
    %296 = vmatpush.bf16.msra.mxu0 0
    %297 = vmatpush.bf16.msra.mxu0 0
    %298 = vmatpush.bf16.msra.mxu0 0
    %299 = vmatpush.bf16.msra.mxu0 %v43
    %300 = vmatpush.bf16.msra.mxu0 %v42
    %301 = vmatpush.bf16.msra.mxu0 %v41
    %302 = vmatpush.bf16.msra.mxu0 %v40
    %303 = vmatmul.bf16.gmra.mxu0 %v293
    %v304 = vpop.f32.mrf.mxu0
    %v305 = vadd.f32 0.0, %v304
    %v306 = vpop.f32.mrf.mxu0
    %307 = vdwg.mxu0
    %v308 = vadd.f32 %v95, %v305
    %v309 = vxor.u32 %v308, 2147483648
    %v310 = vmul.f32 %v309, 1.442695
    %v311 = vpow.pop %v310
    %v312 = vadd.f32 %v311, 1.0
    %v313 = vrcp.pop %v312
    %v314 = vmul.f32 %v312, %v313
    %v315 = vsub.f32 1.0, %v314
    %v316 = vmul.f32 %v313, %v315
    %v317 = vadd.f32 %v313, %v316
    %vm318 = vweird.f32 %v312
    %vm319 = vweird.f32 %v313
    %vm320 = vmor %vm318, %vm319
    %v321 = vsel %vm320, %v313, %v317
    %v322 = vand.u32 2147483647, %v312
    %vm323 = vcmp.eq.f32.partialorder %v322, 8.507059e+37
    %v324 = vand.u32 %v312, 2147483648
    %v325 = vor.u32 1.1754944e-38, %v324
    %v326 = vsel %vm323, %v325, %v321
    %v327 = vmul.f32 1.0, %v326
    %v328 = vmul.f32 %v327, %v279
    %v329 = vmul.f32 %v327, 2.0
    %v330 = vsub.f32 %v329, 1.0
    %332 = vrot.lane.b32.xlu0 %v330, 64
    %v333 = vpop.permute.xlu0 %332
    %v335 = vmul.f32 %v327, %v333
    %337 = vrot.lane.b32.xlu0 %v335, 32
    %v338 = vpop.permute.xlu0 %337
    %v340 = vadd.f32 %v328, %v338
    %v341 = vtanh.pop %v340
    %343 = vrot.lane.b32.xlu0 %v341, 64
    %v344 = vpop.permute.xlu0 %343
    %v346 = vmul.f32 %v327, %v344
    %348 = vrot.lane.b32.xlu0 %v346, 32
    %v349 = vpop.permute.xlu0 %348
    %v351 = vsel %vm167, %v349, %v340
    %v352 = vpack.c.bf16 %v351, %v351
    %v354 = vsel %vm107, %v352, 0
    %356 = vmatpush.bf16.msra.mxu0 0
    %357 = vmatpush.bf16.msra.mxu0 0
    %358 = vmatpush.bf16.msra.mxu0 0
    %359 = vmatpush.bf16.msra.mxu0 0
    %360 = vmatpush.bf16.msra.mxu0 %v43
    %361 = vmatpush.bf16.msra.mxu0 %v42
    %362 = vmatpush.bf16.msra.mxu0 %v41
    %363 = vmatpush.bf16.msra.mxu0 %v40
    %364 = vmatmul.bf16.gmra.mxu0 %v354
    %v365 = vpop.f32.mrf.mxu0
    %v366 = vadd.f32 0.0, %v365
    %v367 = vpop.f32.mrf.mxu0
    %368 = vdwg.mxu0
    %v369 = vadd.f32 %v98, %v366
    %v370 = vxor.u32 %v369, 2147483648
    %v371 = vmul.f32 %v370, 1.442695
    %v372 = vpow.pop %v371
    %v373 = vadd.f32 %v372, 1.0
    %v374 = vrcp.pop %v373
    %v375 = vmul.f32 %v373, %v374
    %v376 = vsub.f32 1.0, %v375
    %v377 = vmul.f32 %v374, %v376
    %v378 = vadd.f32 %v374, %v377
    %vm379 = vweird.f32 %v373
    %vm380 = vweird.f32 %v374
    %vm381 = vmor %vm379, %vm380
    %v382 = vsel %vm381, %v374, %v378
    %v383 = vand.u32 2147483647, %v373
    %vm384 = vcmp.eq.f32.partialorder %v383, 8.507059e+37
    %v385 = vand.u32 %v373, 2147483648
    %v386 = vor.u32 1.1754944e-38, %v385
    %v387 = vsel %vm384, %v386, %v382
    %v388 = vmul.f32 1.0, %v387
    %v389 = vmul.f32 %v388, %v340
    %v390 = vmul.f32 %v388, 2.0
    %v391 = vsub.f32 %v390, 1.0
    %393 = vrot.lane.b32.xlu0 %v391, 64
    %v394 = vpop.permute.xlu0 %393
    %v396 = vmul.f32 %v388, %v394
    %398 = vrot.lane.b32.xlu0 %v396, 32
    %v399 = vpop.permute.xlu0 %398
    %v401 = vadd.f32 %v389, %v399
    %v402 = vtanh.pop %v401
    %404 = vrot.lane.b32.xlu0 %v402, 64
    %v405 = vpop.permute.xlu0 %404
    %v407 = vmul.f32 %v388, %v405
    %409 = vrot.lane.b32.xlu0 %v407, 32
    %v410 = vpop.permute.xlu0 %409
    %v412 = vsel %vm167, %v410, %v401
    %v413 = vpack.c.bf16 %v412, %v412
    %v415 = vsel %vm107, %v413, 0
    %417 = vmatpush.bf16.msra.mxu0 0
    %418 = vmatpush.bf16.msra.mxu0 0
    %419 = vmatpush.bf16.msra.mxu0 0
    %420 = vmatpush.bf16.msra.mxu0 0
    %421 = vmatpush.bf16.msra.mxu0 %v43
    %422 = vmatpush.bf16.msra.mxu0 %v42
    %423 = vmatpush.bf16.msra.mxu0 %v41
    %424 = vmatpush.bf16.msra.mxu0 %v40
    %425 = vmatmul.bf16.gmra.mxu0 %v415
    %v426 = vpop.f32.mrf.mxu0
    %v427 = vadd.f32 0.0, %v426
    %v428 = vpop.f32.mrf.mxu0
    %429 = vdwg.mxu0
    %v430 = vadd.f32 %v100, %v427
    %v431 = vxor.u32 %v430, 2147483648
    %v432 = vmul.f32 %v431, 1.442695
    %v433 = vpow.pop %v432
    %v434 = vadd.f32 %v433, 1.0
    %v435 = vrcp.pop %v434
    %v436 = vmul.f32 %v434, %v435
    %v437 = vsub.f32 1.0, %v436
    %v438 = vmul.f32 %v435, %v437
    %v439 = vadd.f32 %v435, %v438
    %vm440 = vweird.f32 %v434
    %vm441 = vweird.f32 %v435
    %vm442 = vmor %vm440, %vm441
    %v443 = vsel %vm442, %v435, %v439
    %v444 = vand.u32 2147483647, %v434
    %vm445 = vcmp.eq.f32.partialorder %v444, 8.507059e+37
    %v446 = vand.u32 %v434, 2147483648
    %v447 = vor.u32 1.1754944e-38, %v446
    %v448 = vsel %vm445, %v447, %v443
    %v449 = vmul.f32 1.0, %v448
    %v450 = vmul.f32 %v449, %v401
    %v451 = vmul.f32 %v449, 2.0
    %v452 = vsub.f32 %v451, 1.0
    %454 = vrot.lane.b32.xlu0 %v452, 64
    %v455 = vpop.permute.xlu0 %454
    %v457 = vmul.f32 %v449, %v455
    %459 = vrot.lane.b32.xlu0 %v457, 32
    %v460 = vpop.permute.xlu0 %459
    %v462 = vadd.f32 %v450, %v460
    %v463 = vtanh.pop %v462
    %465 = vrot.lane.b32.xlu0 %v463, 64
    %v466 = vpop.permute.xlu0 %465
    %v468 = vmul.f32 %v449, %v466
    %470 = vrot.lane.b32.xlu0 %v468, 32
    %v471 = vpop.permute.xlu0 %470
    %v473 = vsel %vm167, %v471, %v462
    %v474 = vpack.c.bf16 %v473, %v473
    %v476 = vsel %vm107, %v474, 0
    %478 = vmatpush.bf16.msra.mxu0 0
    %479 = vmatpush.bf16.msra.mxu0 0
    %480 = vmatpush.bf16.msra.mxu0 0
    %481 = vmatpush.bf16.msra.mxu0 0
    %482 = vmatpush.bf16.msra.mxu0 %v43
    %483 = vmatpush.bf16.msra.mxu0 %v42
    %484 = vmatpush.bf16.msra.mxu0 %v41
    %485 = vmatpush.bf16.msra.mxu0 %v40
    %486 = vmatmul.bf16.gmra.mxu0 %v476
    %v487 = vpop.f32.mrf.mxu0
    %v488 = vadd.f32 0.0, %v487
    %v489 = vpop.f32.mrf.mxu0
    %490 = vdwg.mxu0
    %v491 = vadd.f32 %v103, %v488
    %v492 = vxor.u32 %v491, 2147483648
    %v493 = vmul.f32 %v492, 1.442695
    %v494 = vpow.pop %v493
    %v495 = vadd.f32 %v494, 1.0
    %v496 = vrcp.pop %v495
    %v497 = vmul.f32 %v495, %v496
    %v498 = vsub.f32 1.0, %v497
    %v499 = vmul.f32 %v496, %v498
    %v500 = vadd.f32 %v496, %v499
    %vm501 = vweird.f32 %v495
    %vm502 = vweird.f32 %v496
    %vm503 = vmor %vm501, %vm502
    %v504 = vsel %vm503, %v496, %v500
    %v505 = vand.u32 2147483647, %v495
    %vm506 = vcmp.eq.f32.partialorder %v505, 8.507059e+37
    %v507 = vand.u32 %v495, 2147483648
    %v508 = vor.u32 1.1754944e-38, %v507
    %v509 = vsel %vm506, %v508, %v504
    %v510 = vmul.f32 1.0, %v509
    %v511 = vmul.f32 %v510, %v462
    %v512 = vmul.f32 %v510, 2.0
    %v513 = vsub.f32 %v512, 1.0
    %515 = vrot.lane.b32.xlu0 %v513, 64
    %v516 = vpop.permute.xlu0 %515
    %v518 = vmul.f32 %v510, %v516
    %520 = vrot.lane.b32.xlu0 %v518, 32
    %v521 = vpop.permute.xlu0 %520
    %v523 = vadd.f32 %v511, %v521
    %v524 = vtanh.pop %v523
    %526 = vrot.lane.b32.xlu0 %v524, 64
    %v527 = vpop.permute.xlu0 %526
    %v529 = vmul.f32 %v510, %v527
    %531 = vrot.lane.b32.xlu0 %v529, 32
    %v532 = vpop.permute.xlu0 %531
    %v534 = vsel %vm167, %v532, %v523
    %v535 = vpack.c.bf16 %v534, %v534
    %v537 = vsel %vm107, %v535, 0
    %539 = vmatpush.bf16.msra.mxu0 0
    %540 = vmatpush.bf16.msra.mxu0 0
    %541 = vmatpush.bf16.msra.mxu0 0
    %542 = vmatpush.bf16.msra.mxu0 0
    %543 = vmatpush.bf16.msra.mxu0 %v43
    %544 = vmatpush.bf16.msra.mxu0 %v42
    %545 = vmatpush.bf16.msra.mxu0 %v41
    %546 = vmatpush.bf16.msra.mxu0 %v40
    %547 = vmatmul.bf16.gmra.mxu0 %v537
    %v548 = vpop.f32.mrf.mxu0
    %v549 = vadd.f32 0.0, %v548
    %v550 = vpop.f32.mrf.mxu0
    %551 = vdwg.mxu0
    %v552 = vadd.f32 %v105, %v549
    %v553 = vxor.u32 %v552, 2147483648
    %v554 = vmul.f32 %v553, 1.442695
    %v555 = vpow.pop %v554
    %v556 = vadd.f32 %v555, 1.0
    %v557 = vrcp.pop %v556
    %v558 = vmul.f32 %v556, %v557
    %v559 = vsub.f32 1.0, %v558
    %v560 = vmul.f32 %v557, %v559
    %v561 = vadd.f32 %v557, %v560
    %vm562 = vweird.f32 %v556
    %vm563 = vweird.f32 %v557
    %vm564 = vmor %vm562, %vm563
    %v565 = vsel %vm564, %v557, %v561
    %v566 = vand.u32 2147483647, %v556
    %vm567 = vcmp.eq.f32.partialorder %v566, 8.507059e+37
    %v568 = vand.u32 %v556, 2147483648
    %v569 = vor.u32 1.1754944e-38, %v568
    %v570 = vsel %vm567, %v569, %v565
    %v571 = vmul.f32 1.0, %v570
    %v572 = vmul.f32 %v571, %v523
    %v573 = vmul.f32 %v571, 2.0
    %v574 = vsub.f32 %v573, 1.0
    %576 = vrot.lane.b32.xlu0 %v574, 64
    %v577 = vpop.permute.xlu0 %576
    %v579 = vmul.f32 %v571, %v577
    %581 = vrot.lane.b32.xlu0 %v579, 32
    %v582 = vpop.permute.xlu0 %581
    %v584 = vadd.f32 %v572, %v582
    %v585 = vtanh.pop %v584
    %587 = vrot.lane.b32.xlu0 %v585, 64
    %v588 = vpop.permute.xlu0 %587
    %v590 = vmul.f32 %v571, %v588
    %v591 = vpack.c.bf16 %v590, %v590
    %v592 = vperm.slane %v51, 0
    %594 = vrot.lane.b32.xlu0 %v591, 32
    %v595 = vpop.permute.xlu0 %594
    %v597 = vsel %vm167, %v595, 0
    %599 = vmatpush.bf16.msra.mxu0 0
    %600 = vmatpush.bf16.msra.mxu0 0
    %601 = vmatpush.bf16.msra.mxu0 0
    %602 = vmatpush.bf16.msra.mxu0 0
    %603 = vmatpush.bf16.msra.mxu0 0
    %604 = vmatpush.bf16.msra.mxu0 0
    %605 = vmatpush.bf16.msra.mxu0 %v49
    %606 = vmatpush.bf16.msra.mxu0 %v48
    %607 = vmatmul.bf16.gmra.mxu0 %v597
    %v608 = vpop.f32.mrf.mxu0
    %v609 = vadd.f32 %v592, %v608
    %v610 = vpop.f32.mrf.mxu0
    %611 = vdwg.mxu0
    %612 = vst [vmem:[#allocation5] sm:$0xff] %v609
    // Predicated region
    $region14: #{tpu_custom_call.1} parent=1 // pred_check
      _
    $region15: #{tpu_custom_call.1} parent=1 // pred_check_branch
      %614 = sbr.rel (0) target = $region17
    $region16: #{tpu_custom_call.1} parent=1 // pred_region
      %616 = vsyncadd [#allocation4], 0
      %s618 = sshll.u32 [#allocation5], 4
      %s619 = int_to_ptr.vmem [resolvable:$true] %s618
      %s620 = sshll.u32 %s2, 4
      %s621 = int_to_ptr.hbm [resolvable:$true] %s620
      %623 = dma.vmem_to_hbm [thread:$0]  %s619, 128, %s621, [#allocation4]
    $region17: #{tpu_custom_call.1} parent=1 // pred_fallthru
      _
    // Predicated region
    $region18: #{tpu_custom_call.1} parent=1 // pred_check
      _
    $region19: #{tpu_custom_call.1} parent=1 // pred_check_branch
      %625 = sbr.rel (0) target = $region21
    $region20: #{tpu_custom_call.1} parent=1 // pred_region
      %627 = dma.done [#allocation4], 128
    $region21: #{tpu_custom_call.1} parent=1 // pred_fallthru
      _
    %628 = vsyncpa [#allocation3], 1
    %629 = vsyncpa [#allocation4], 1

</llo_original>
